<compile_context>
chip_gen: v7x
topology: tpu7x:2x2x1
jax: 0.10.0
libtpu: 0.0.40
codegen_flags: <defaults>
</compile_context>

<pallas_src>
import functools

import jax
import jax.numpy as jnp
from jax.experimental import pallas as pl
from jax.experimental.pallas import tpu as pltpu


def _ffn_kernel(x_ref, w1_ref, b1_ref, w2_ref, b2_ref, o_ref, acc_ref):
    # x_ref:  (TM, C)    w1_ref: (C, TH)   b1_ref: (1, TH)
    # w2_ref: (TH, C)    b2_ref: (1, C)    o_ref:  (TM, C)
    # acc_ref: (TM, C) f32 scratch, lives across the H (reduction) grid axis.
    hk = pl.program_id(1)

    @pl.when(hk == 0)
    def _init():
        acc_ref[...] = jnp.zeros_like(acc_ref)

    # First matmul on this hidden-column tile; bias + ReLU in f32.
    h = jnp.dot(x_ref[...], w1_ref[...], preferred_element_type=jnp.float32)
    h = jnp.maximum(h + b1_ref[...], 0.0)

    # Partial contribution of this hidden tile to the output (f32 accumulate).
    acc_ref[...] += jnp.dot(h.astype(w2_ref.dtype), w2_ref[...],
                            preferred_element_type=jnp.float32)

    @pl.when(hk == pl.num_programs(1) - 1)
    def _finalize():
        o_ref[...] = (acc_ref[...] + b2_ref[...]).astype(o_ref.dtype)


def _round_up(x, m):
    return (x + m - 1) // m * m


def _pick_hidden_tile(h):
    # Largest 128-aligned tile (256-multiples preferred for v6e/v7x MXU) that
    # divides H; fall back to the full width for tiny / unaligned toy shapes.
    for th in (2048, 1024, 512, 256, 128):
        if h % th == 0:
            return th
    return h


@jax.jit
def feed_forward(x, w1, b1, w2, b2):
    """x: (B, T, C). w1: (C, 4C), b1: (1, 4C), w2: (4C, C), b2: (1, C)."""
    B, T, C = x.shape
    H = w1.shape[1]               # 4 * C
    M = B * T

    # --- tile selection (static under jit) ---------------------------------
    TM = min(256, _round_up(M, 8))      # row tile, multiple of 8 sublanes
    Mp = _round_up(M, TM)               # pad rows so the grid divides evenly
    TH = _pick_hidden_tile(H)           # hidden tile, 128/256-aligned

    x2d = x.reshape(M, C)
    if Mp != M:
        x2d = jnp.pad(x2d, ((0, Mp - M), (0, 0)))

    grid = (Mp // TM, H // TH)          # (parallel row tiles, H reduction)

    itemsize = jnp.dtype(x.dtype).itemsize
    flops = 4 * M * C * H               # two matmuls: 2*M*C*H each
    bytes_accessed = (
        Mp * C * itemsize                                   # x
        + w1.size * jnp.dtype(w1.dtype).itemsize            # w1
        + b1.size * jnp.dtype(b1.dtype).itemsize            # b1
        + w2.size * jnp.dtype(w2.dtype).itemsize            # w2
        + b2.size * jnp.dtype(b2.dtype).itemsize            # b2
        + Mp * C * itemsize)                                # out

    out2d = pl.pallas_call(
        _ffn_kernel,
        out_shape=jax.ShapeDtypeStruct((Mp, C), x.dtype),
        grid_spec=pltpu.PrefetchScalarGridSpec(
            num_scalar_prefetch=0,
            grid=grid,
            in_specs=[
                pl.BlockSpec((TM, C), lambda i, k: (i, 0)),   # x row tile
                pl.BlockSpec((C, TH), lambda i, k: (0, k)),   # w1 column tile
                pl.BlockSpec((1, TH), lambda i, k: (0, k)),   # b1 tile
                pl.BlockSpec((TH, C), lambda i, k: (k, 0)),   # w2 row tile
                pl.BlockSpec((1, C), lambda i, k: (0, 0)),    # b2 (resident)
            ],
            out_specs=pl.BlockSpec((TM, C), lambda i, k: (i, 0)),
            scratch_shapes=[pltpu.VMEM((TM, C), jnp.float32)],
        ),
        compiler_params=pltpu.CompilerParams(
            # M axis shards across v7x's 2 TCs; H (reduction) stays arbitrary.
            dimension_semantics=("parallel", "arbitrary"),
            # Explicit budget; conservative enough for v7x's 64 MiB VMEM.
            vmem_limit_bytes=48 * 1024 * 1024,
        ),
        cost_estimate=pl.CostEstimate(
            flops=flops, transcendentals=0, bytes_accessed=bytes_accessed),
    )(x2d, w1, b1, w2, b2)

    return out2d[:M].reshape(B, T, C)


def init_params(key, n_embd, dtype=jnp.float32):
    """Deterministic init matching nn.Linear's U(-1/sqrt(fan_in), 1/sqrt(fan_in)).

    Weights are stored pre-transposed to (in_features, out_features), i.e.
    y = x @ W + b (PyTorch computes y = x @ W.T + b).
    """
    hidden = 4 * n_embd
    k1, k2, k3, k4 = jax.random.split(key, 4)
    bound1 = 1.0 / jnp.sqrt(jnp.float32(n_embd))
    bound2 = 1.0 / jnp.sqrt(jnp.float32(hidden))
    w1 = jax.random.uniform(k1, (n_embd, hidden), dtype, -bound1, bound1)
    b1 = jax.random.uniform(k2, (1, hidden), dtype, -bound1, bound1)
    w2 = jax.random.uniform(k3, (hidden, n_embd), dtype, -bound2, bound2)
    b2 = jax.random.uniform(k4, (1, n_embd), dtype, -bound2, bound2)
    return w1, b1, w2, b2


if __name__ == "__main__":
    B, T, n_embd = 2, 8, 32   # small shapes; hidden = 128, M = 16

    key = jax.random.PRNGKey(0)
    kx, kp = jax.random.split(key)
    x = jax.random.normal(kx, (B, T, n_embd), dtype=jnp.float32)
    w1, b1, w2, b2 = init_params(kp, n_embd, dtype=jnp.float32)

    # f32 path: tight check against the plain-JAX reference (p_drop=0 -> identity).
    out = jax.block_until_ready(feed_forward(x, w1, b1, w2, b2))
    ref = jnp.maximum(x.reshape(-1, n_embd) @ w1 + b1, 0.0) @ w2 + b2
    ref = ref.reshape(B, T, n_embd)
    assert out.shape == (B, T, n_embd)
    assert jnp.allclose(out, ref, atol=1e-5, rtol=1e-5)

    # bf16 path (bandwidth-optimal configuration): loose tolerance vs f32 ref.
    xb = x.astype(jnp.bfloat16)
    w1b, b1b, w2b, b2b = (t.astype(jnp.bfloat16) for t in (w1, b1, w2, b2))
    out_bf16 = jax.block_until_ready(feed_forward(xb, w1b, b1b, w2b, b2b))
    assert out_bf16.dtype == jnp.bfloat16
    assert jnp.allclose(out_bf16.astype(jnp.float32), ref, atol=1e-1, rtol=1e-1)

    print("KERNEL_OK")
</pallas_src>

<mosaic_0001>
module attributes {stable_mosaic.version = 11 : i64} {
  func.func @_ffn_kernel(%arg0: i32, %arg1: i32, %arg2: memref<16x32xf32, #tpu.memory_space<vmem>>, %arg3: memref<32x128xf32, #tpu.memory_space<vmem>>, %arg4: memref<1x128xf32, #tpu.memory_space<vmem>>, %arg5: memref<128x32xf32, #tpu.memory_space<vmem>>, %arg6: memref<1x32xf32, #tpu.memory_space<vmem>>, %arg7: memref<16x32xf32, #tpu.memory_space<vmem>>, %arg8: memref<16x32xf32, #tpu.memory_space<vmem>>) attributes {dimension_semantics = [#tpu.dimension_semantics<parallel>, #tpu.dimension_semantics<arbitrary>], iteration_bounds = array<i64: 1, 1>, scalar_prefetch = 0 : i64, scratch_operands = 1 : i64, tpu.core_type = #tpu.core_type<tc>, window_params = [{transform_indices = @transform_0, window_bounds = array<i64: 16, 32>}, {transform_indices = @transform_1, window_bounds = array<i64: 32, 128>}, {transform_indices = @transform_2, window_bounds = array<i64: 1, 128>}, {transform_indices = @transform_3, window_bounds = array<i64: 128, 32>}, {pipeline_mode = #tpu.pipeline_mode<synchronous>, transform_indices = @transform_4, window_bounds = array<i64: 1, 32>}, {transform_indices = @transform_5, window_bounds = array<i64: 16, 32>}]} {
    %c0_i32 = arith.constant 0 : i32
    %0 = arith.cmpi eq, %arg1, %c0_i32 : i32
    %1 = arith.extui %0 : i1 to i32
    %c0_i32_0 = arith.constant 0 : i32
    %2 = arith.cmpi ne, %1, %c0_i32_0 : i32
    scf.if %2 {
      %cst_16 = arith.constant 0.000000e+00 : f32
      %19 = vector.broadcast %cst_16 : f32 to vector<16x32xf32>
      %c0_17 = arith.constant 0 : index
      %c0_18 = arith.constant 0 : index
      %20 = vector.load %arg8[%c0_17, %c0_18] : memref<16x32xf32, #tpu.memory_space<vmem>>, vector<16x32xf32>
      tpu.vector_store %arg8[%c0_17, %c0_18], %19 {strides = array<i32>} : memref<16x32xf32, #tpu.memory_space<vmem>>, vector<16x32xf32>,
    } else {
    }
    %c0 = arith.constant 0 : index
    %c0_1 = arith.constant 0 : index
    %3 = vector.load %arg2[%c0, %c0_1] : memref<16x32xf32, #tpu.memory_space<vmem>>, vector<16x32xf32>
    %c0_2 = arith.constant 0 : index
    %c0_3 = arith.constant 0 : index
    %4 = vector.load %arg3[%c0_2, %c0_3] : memref<32x128xf32, #tpu.memory_space<vmem>>, vector<32x128xf32>
    %cst = arith.constant dense<0.000000e+00> : vector<16x128xf32>
    %5 = tpu.matmul %3, %4, %cst {dimension_numbers = #tpu.dot_dimension_numbers<[1], [0], [0], [1], [0, 0, 1, 1], [], []>} : vector<16x32xf32>, vector<32x128xf32>, vector<16x128xf32> -> vector<16x128xf32>
    %c0_4 = arith.constant 0 : index
    %c0_5 = arith.constant 0 : index
    %6 = vector.load %arg4[%c0_4, %c0_5] : memref<1x128xf32, #tpu.memory_space<vmem>>, vector<1x128xf32>
    %7 = vector.broadcast %6 : vector<1x128xf32> to vector<16x128xf32>
    %8 = arith.addf %5, %7 : vector<16x128xf32>
    %cst_6 = arith.constant 0.000000e+00 : f32
    %9 = vector.broadcast %cst_6 : f32 to vector<16x128xf32>
    %10 = arith.maximumf %8, %9 : vector<16x128xf32>
    %c0_7 = arith.constant 0 : index
    %c0_8 = arith.constant 0 : index
    %11 = vector.load %arg8[%c0_7, %c0_8] : memref<16x32xf32, #tpu.memory_space<vmem>>, vector<16x32xf32>
    %c0_9 = arith.constant 0 : index
    %c0_10 = arith.constant 0 : index
    %12 = vector.load %arg5[%c0_9, %c0_10] : memref<128x32xf32, #tpu.memory_space<vmem>>, vector<128x32xf32>
    %cst_11 = arith.constant dense<0.000000e+00> : vector<16x32xf32>
    %13 = tpu.matmul %10, %12, %cst_11 {dimension_numbers = #tpu.dot_dimension_numbers<[1], [0], [0], [1], [0, 0, 1, 1], [], []>} : vector<16x128xf32>, vector<128x32xf32>, vector<16x32xf32> -> vector<16x32xf32>
    %14 = arith.addf %11, %13 : vector<16x32xf32>
    %c0_12 = arith.constant 0 : index
    %c0_13 = arith.constant 0 : index
    %15 = vector.load %arg8[%c0_12, %c0_13] : memref<16x32xf32, #tpu.memory_space<vmem>>, vector<16x32xf32>
    tpu.vector_store %arg8[%c0_12, %c0_13], %14 {strides = array<i32>} : memref<16x32xf32, #tpu.memory_space<vmem>>, vector<16x32xf32>,
    %c0_i32_14 = arith.constant 0 : i32
    %16 = arith.cmpi eq, %arg1, %c0_i32_14 : i32
    %17 = arith.extui %16 : i1 to i32
    %c0_i32_15 = arith.constant 0 : i32
    %18 = arith.cmpi ne, %17, %c0_i32_15 : i32
    scf.if %18 {
      %c0_16 = arith.constant 0 : index
      %c0_17 = arith.constant 0 : index
      %19 = vector.load %arg8[%c0_16, %c0_17] : memref<16x32xf32, #tpu.memory_space<vmem>>, vector<16x32xf32>
      %c0_18 = arith.constant 0 : index
      %c0_19 = arith.constant 0 : index
      %20 = vector.load %arg6[%c0_18, %c0_19] : memref<1x32xf32, #tpu.memory_space<vmem>>, vector<1x32xf32>
      %21 = vector.broadcast %20 : vector<1x32xf32> to vector<16x32xf32>
      %22 = arith.addf %19, %21 : vector<16x32xf32>
      %c0_20 = arith.constant 0 : index
      %c0_21 = arith.constant 0 : index
      %23 = vector.load %arg7[%c0_20, %c0_21] : memref<16x32xf32, #tpu.memory_space<vmem>>, vector<16x32xf32>
      tpu.vector_store %arg7[%c0_20, %c0_21], %22 {strides = array<i32>} : memref<16x32xf32, #tpu.memory_space<vmem>>, vector<16x32xf32>,
    } else {
    }
    return
  }
  func.func @transform_0(%arg0: i32, %arg1: i32) -> (i32, i32) {
    %c0_i32 = arith.constant 0 : i32
    %c0_i32_0 = arith.constant 0 : i32
    return %arg0, %c0_i32 : i32, i32
  }
  func.func @transform_1(%arg0: i32, %arg1: i32) -> (i32, i32) {
    %c0_i32 = arith.constant 0 : i32
    %c0_i32_0 = arith.constant 0 : i32
    return %c0_i32, %arg1 : i32, i32
  }
  func.func @transform_2(%arg0: i32, %arg1: i32) -> (i32, i32) {
    %c0_i32 = arith.constant 0 : i32
    %c0_i32_0 = arith.constant 0 : i32
    return %c0_i32, %arg1 : i32, i32
  }
  func.func @transform_3(%arg0: i32, %arg1: i32) -> (i32, i32) {
    %c0_i32 = arith.constant 0 : i32
    %c0_i32_0 = arith.constant 0 : i32
    return %arg1, %c0_i32 : i32, i32
  }
  func.func @transform_4(%arg0: i32, %arg1: i32) -> (i32, i32) {
    %c0_i32 = arith.constant 0 : i32
    %c0_i32_0 = arith.constant 0 : i32
    %c0_i32_1 = arith.constant 0 : i32
    return %c0_i32, %c0_i32_0 : i32, i32
  }
  func.func @transform_5(%arg0: i32, %arg1: i32) -> (i32, i32) {
    %c0_i32 = arith.constant 0 : i32
    %c0_i32_0 = arith.constant 0 : i32
    return %arg0, %c0_i32 : i32, i32
  }
}

</mosaic_0001>

<llo_original>
// kernel: feed_forward.1
$region0: #{feed_forward.1}
  #allocation0 [shape = 'u32[]', space=smem, size = 0x4, offset = 0x4, fixed_abs, tag = 'smem constant byte address 0x4 - core index']
  #allocation1 [shape = 'u32[144,128]{1,0:T(1,128)}', space=vmem, size = 0x12000, scoped, tag = 'internal scratch']
  #allocation2 [shape = 'f32[16,32]{1,0:T(8,128)}', space=vmem, size = 0x2000, scoped, tag = 'scratch operand']
  %s0 = inlined_call_operand.vmem [shape: f32[16,32], index: 0, kind: input, shape index: {}]
  %s1 = inlined_call_operand.vmem [shape: f32[32,128], index: 1, kind: input, shape index: {}]
  %s2 = inlined_call_operand.vmem [shape: f32[1,128], index: 2, kind: input, shape index: {}]
  %s3 = inlined_call_operand.vmem [shape: f32[128,32], index: 3, kind: input, shape index: {}]
  %s4 = inlined_call_operand.vmem [shape: f32[1,32], index: 4, kind: input, shape index: {}]
  %s5 = inlined_call_operand.hbm [shape: f32[16,32], index: 5, kind: output, shape index: {}]
  %s6 = sld [smem:[#allocation0]]
  $region38: #{feed_forward.1} parent=0
    _
  %s8 = ssub.s32 1, %s6
  %s9 = scalar_select 0, %s8, %s6
  $region1: #{feed_forward.1} parent=0
    #allocation3 [shape = 'u8[8192]{0}', space=vmem, size = 0x2000, scoped, tag = 'output window, operand 0, single buffered']
    #allocation4 [shape = 's32[1]{0}', space=sflag, size = 0x4, scoped, tag = 'scoped memory for feed_forward.1']
    %10 = vsyncpa [#allocation4], 0
    // Predicated region
    $region2: #{feed_forward.1} parent=1 // pred_check
      _
    $region3: #{feed_forward.1} parent=1 // pred_check_branch
      %12 = sbr.rel (0) target = $region5
    $region4: #{feed_forward.1} parent=1 // pred_region
      _
    $region5: #{feed_forward.1} parent=1 // pred_fallthru
      _
    // Predicated region
    $region6: #{feed_forward.1} parent=1 // pred_check
      _
    $region7: #{feed_forward.1} parent=1 // pred_check_branch
      %14 = sbr.rel (0) target = $region9
    $region8: #{feed_forward.1} parent=1 // pred_region
      _
    $region9: #{feed_forward.1} parent=1 // pred_fallthru
      _
    // Predicated region
    $region10: #{feed_forward.1} parent=1 // pred_check
      _
    $region11: #{feed_forward.1} parent=1 // pred_check_branch
      %16 = sbr.rel (0) target = $region13
    $region12: #{feed_forward.1} parent=1 // pred_region
      _
    $region13: #{feed_forward.1} parent=1 // pred_fallthru
      _
    // Predicated region
    $region14: #{feed_forward.1} parent=1 // pred_check
      _
    $region15: #{feed_forward.1} parent=1 // pred_check_branch
      %18 = sbr.rel (0) target = $region17
    $region16: #{feed_forward.1} parent=1 // pred_region
      _
    $region17: #{feed_forward.1} parent=1 // pred_fallthru
      _
    // Predicated region
    $region18: #{feed_forward.1} parent=1 // pred_check
      _
    $region19: #{feed_forward.1} parent=1 // pred_check_branch
      %20 = sbr.rel (0) target = $region21
    $region20: #{feed_forward.1} parent=1 // pred_region
      _
    $region21: #{feed_forward.1} parent=1 // pred_fallthru
      _
    %p21 = scmp.eq.s32.totalorder 0, 0
    // Predicated region
    $region22: #{feed_forward.1} parent=1 // pred_check
      %p22 = pneg %p21
    $region23: #{feed_forward.1} parent=1 // pred_check_branch
      %24 = sbr.rel (%p22) target = $region25
    $region24: #{feed_forward.1} parent=1 // pred_region
      %vm25 = vcmask 261120
      %26 = vst.msk [vmem:[#allocation2] sm:$0xff] %vm25, 0.0
      %27 = vst.msk [vmem:[#allocation2 + $0x8] sm:$0xff] %vm25, 0.0
    $region25: #{feed_forward.1} parent=1 // pred_fallthru
      _
    %v28 = vld [vmem:[%s0] sm:$0xff]
    %v29 = vld [vmem:[%s0 + $0x8] sm:$0xff]
    %v30 = vld [vmem:[%s1] sm:$0xff]
    %v31 = vld [vmem:[%s1 + $0x8] sm:$0xff]
    %v32 = vld [vmem:[%s1 + $0x10] sm:$0xff]
    %v33 = vld [vmem:[%s1 + $0x18] sm:$0xff]
    %v34 = vld [vmem:[%s2] sm:$0x1]
    %v36 = vlaneseq
    %v37 = vshrl.u32 %v36, 7
    %v38 = vsub.s32 0, %v37
    %v39 = vrot.slane %v34, %v38
    %vm41 = vcmask 261120
    %v43 = vsel %vm41, %v28, 0
    %v46 = vsel %vm41, %v29, 0
    %48 = vmatprep.subr.mxu0 0.0
    %49 = vmatpush1.msra.mxu0 %v30
    %50 = vmatprep.subr.mxu0 0.0
    %51 = vmatpush1.msra.mxu0 %v31
    %52 = vmatprep.subr.mxu0 0.0
    %53 = vmatpush1.msra.mxu0 %v32
    %54 = vmatprep.subr.mxu0 0.0
    %55 = vmatpush1.msra.mxu0 %v33
    %56 = vmatprep.subr.mxu0 0.0
    %57 = vmatpush1.msra.mxu0 0.0
    %58 = vmatprep.subr.mxu0 0.0
    %59 = vmatpush1.msra.mxu0 0.0
    %60 = vmatprep.subr.mxu0 0.0
    %61 = vmatpush1.msra.mxu0 0.0
    %62 = vmatprep.subr.mxu0 0.0
    %63 = vmatpush1.msra.mxu0 0.0
    %64 = vmatprep.subr.mxu0 0.0
    %65 = vmatpush1.msra.mxu0 0.0
    %66 = vmatprep.subr.mxu0 0.0
    %67 = vmatpush1.msra.mxu0 0.0
    %68 = vmatprep.subr.mxu0 0.0
    %69 = vmatpush1.msra.mxu0 0.0
    %70 = vmatprep.subr.mxu0 0.0
    %71 = vmatpush1.msra.mxu0 0.0
    %72 = vmatprep.subr.mxu0 0.0
    %73 = vmatpush1.msra.mxu0 0.0
    %74 = vmatprep.subr.mxu0 0.0
    %75 = vmatpush1.msra.mxu0 0.0
    %76 = vmatprep.subr.mxu0 0.0
    %77 = vmatpush1.msra.mxu0 0.0
    %78 = vmatprep.subr.mxu0 0.0
    %79 = vmatpush1.msra.mxu0 0.0
    %80 = vmatprep.subr.mxu0 0.0
    %81 = vmatpush1.msra.mxu0 0.0
    %82 = vmatprep.subr.mxu0 0.0
    %83 = vmatpush1.msra.mxu0 0.0
    %84 = vmatprep.subr.mxu0 0.0
    %85 = vmatpush1.msra.mxu0 0.0
    %86 = vmatprep.subr.mxu0 0.0
    %87 = vmatpush1.msra.mxu0 0.0
    %88 = vmatprep.subr.mxu0 0.0
    %89 = vmatpush1.msra.mxu0 0.0
    %90 = vmatprep.subr.mxu0 0.0
    %91 = vmatpush1.msra.mxu0 0.0
    %92 = vmatprep.subr.mxu0 0.0
    %93 = vmatpush1.msra.mxu0 0.0
    %94 = vmatprep.subr.mxu0 0.0
    %95 = vmatpush1.msra.mxu0 0.0
    %96 = vmatprep.subr.mxu0 0.0
    %97 = vmatpush1.msra.mxu0 0.0
    %98 = vmatprep.subr.mxu0 0.0
    %99 = vmatpush1.msra.mxu0 0.0
    %100 = vmatprep.subr.mxu0 0.0
    %101 = vmatpush1.msra.mxu0 0.0
    %102 = vmatprep.subr.mxu0 0.0
    %103 = vmatpush1.msra.mxu0 0.0
    %104 = vmatprep.subr.mxu0 0.0
    %105 = vmatpush1.msra.mxu0 0.0
    %106 = vmatprep.subr.mxu0 0.0
    %107 = vmatpush1.msra.mxu0 0.0
    %108 = vmatprep.subr.mxu0 0.0
    %109 = vmatpush1.msra.mxu0 0.0
    %110 = vmatprep.subr.mxu0 0.0
    %111 = vmatpush1.msra.mxu0 0.0
    %112 = vmatprep.mubr.f32.mxu0 0.0
    %113 = vmatmul.mubr.f32.gmra.mrb[0].mxu0 %v43
    %v114 = vpop.f32.mrb[0].mxu0
    %v115 = vadd.f32 %v39, %v114
    %v116 = vpop.f32.mrb[0].mxu0
    %117 = vmatprep.mubr.f32.mxu0 0.0
    %118 = vmatmul.mubr.f32.gmra.mrb[0].mxu0 %v46
    %v119 = vpop.f32.mrb[0].mxu0
    %v120 = vadd.f32 %v39, %v119
    %v121 = vpop.f32.mrb[0].mxu0
    %122 = vdwg.mxu0
    %v123 = vmax.f32 %v115, 0.0
    %v124 = vmax.f32 %v120, 0.0
    %v125 = vld [vmem:[#allocation2] sm:$0xff]
    %v126 = vld [vmem:[#allocation2 + $0x8] sm:$0xff]
    %v127 = vld [vmem:[%s3] sm:$0xff]
    %v128 = vld [vmem:[%s3 + $0x8] sm:$0xff]
    %v129 = vld [vmem:[%s3 + $0x10] sm:$0xff]
    %v130 = vld [vmem:[%s3 + $0x18] sm:$0xff]
    %v131 = vld [vmem:[%s3 + $0x20] sm:$0xff]
    %v132 = vld [vmem:[%s3 + $0x28] sm:$0xff]
    %v133 = vld [vmem:[%s3 + $0x30] sm:$0xff]
    %v134 = vld [vmem:[%s3 + $0x38] sm:$0xff]
    %v135 = vld [vmem:[%s3 + $0x40] sm:$0xff]
    %v136 = vld [vmem:[%s3 + $0x48] sm:$0xff]
    %v137 = vld [vmem:[%s3 + $0x50] sm:$0xff]
    %v138 = vld [vmem:[%s3 + $0x58] sm:$0xff]
    %v139 = vld [vmem:[%s3 + $0x60] sm:$0xff]
    %v140 = vld [vmem:[%s3 + $0x68] sm:$0xff]
    %v141 = vld [vmem:[%s3 + $0x70] sm:$0xff]
    %v142 = vld [vmem:[%s3 + $0x78] sm:$0xff]
    %143 = vmatprep.subr.mxu0 0.0
    %144 = vmatpush1.msra.mxu0 %v127
    %145 = vmatprep.subr.mxu0 0.0
    %146 = vmatpush1.msra.mxu0 %v128
    %147 = vmatprep.subr.mxu0 0.0
    %148 = vmatpush1.msra.mxu0 %v129
    %149 = vmatprep.subr.mxu0 0.0
    %150 = vmatpush1.msra.mxu0 %v130
    %151 = vmatprep.subr.mxu0 0.0
    %152 = vmatpush1.msra.mxu0 %v131
    %153 = vmatprep.subr.mxu0 0.0
    %154 = vmatpush1.msra.mxu0 %v132
    %155 = vmatprep.subr.mxu0 0.0
    %156 = vmatpush1.msra.mxu0 %v133
    %157 = vmatprep.subr.mxu0 0.0
    %158 = vmatpush1.msra.mxu0 %v134
    %159 = vmatprep.subr.mxu0 0.0
    %160 = vmatpush1.msra.mxu0 %v135
    %161 = vmatprep.subr.mxu0 0.0
    %162 = vmatpush1.msra.mxu0 %v136
    %163 = vmatprep.subr.mxu0 0.0
    %164 = vmatpush1.msra.mxu0 %v137
    %165 = vmatprep.subr.mxu0 0.0
    %166 = vmatpush1.msra.mxu0 %v138
    %167 = vmatprep.subr.mxu0 0.0
    %168 = vmatpush1.msra.mxu0 %v139
    %169 = vmatprep.subr.mxu0 0.0
    %170 = vmatpush1.msra.mxu0 %v140
    %171 = vmatprep.subr.mxu0 0.0
    %172 = vmatpush1.msra.mxu0 %v141
    %173 = vmatprep.subr.mxu0 0.0
    %174 = vmatpush1.msra.mxu0 %v142
    %175 = vmatprep.subr.mxu0 0.0
    %176 = vmatpush1.msra.mxu0 0.0
    %177 = vmatprep.subr.mxu0 0.0
    %178 = vmatpush1.msra.mxu0 0.0
    %179 = vmatprep.subr.mxu0 0.0
    %180 = vmatpush1.msra.mxu0 0.0
    %181 = vmatprep.subr.mxu0 0.0
    %182 = vmatpush1.msra.mxu0 0.0
    %183 = vmatprep.subr.mxu0 0.0
    %184 = vmatpush1.msra.mxu0 0.0
    %185 = vmatprep.subr.mxu0 0.0
    %186 = vmatpush1.msra.mxu0 0.0
    %187 = vmatprep.subr.mxu0 0.0
    %188 = vmatpush1.msra.mxu0 0.0
    %189 = vmatprep.subr.mxu0 0.0
    %190 = vmatpush1.msra.mxu0 0.0
    %191 = vmatprep.subr.mxu0 0.0
    %192 = vmatpush1.msra.mxu0 0.0
    %193 = vmatprep.subr.mxu0 0.0
    %194 = vmatpush1.msra.mxu0 0.0
    %195 = vmatprep.subr.mxu0 0.0
    %196 = vmatpush1.msra.mxu0 0.0
    %197 = vmatprep.subr.mxu0 0.0
    %198 = vmatpush1.msra.mxu0 0.0
    %199 = vmatprep.subr.mxu0 0.0
    %200 = vmatpush1.msra.mxu0 0.0
    %201 = vmatprep.subr.mxu0 0.0
    %202 = vmatpush1.msra.mxu0 0.0
    %203 = vmatprep.subr.mxu0 0.0
    %204 = vmatpush1.msra.mxu0 0.0
    %205 = vmatprep.subr.mxu0 0.0
    %206 = vmatpush1.msra.mxu0 0.0
    %207 = vmatprep.mubr.f32.mxu0 0.0
    %208 = vmatmul.mubr.f32.gmra.mrb[0].mxu0 %v123
    %v209 = vpop.f32.mrb[0].mxu0
    %v210 = vadd.f32 0.0, %v209
    %v211 = vpop.f32.mrb[0].mxu0
    %212 = vmatprep.mubr.f32.mxu0 0.0
    %213 = vmatmul.mubr.f32.gmra.mrb[0].mxu0 %v124
    %v214 = vpop.f32.mrb[0].mxu0
    %v215 = vadd.f32 0.0, %v214
    %v216 = vpop.f32.mrb[0].mxu0
    %217 = vdwg.mxu0
    %v218 = vadd.f32 %v125, %v210
    %v219 = vadd.f32 %v126, %v215
    %220 = vst.msk [vmem:[#allocation2] sm:$0xff] %vm41, %v218
    %221 = vst.msk [vmem:[#allocation2 + $0x8] sm:$0xff] %vm41, %v219
    // Predicated region
    $region26: #{feed_forward.1} parent=1 // pred_check
      %p222 = pneg %p21
    $region27: #{feed_forward.1} parent=1 // pred_check_branch
      %224 = sbr.rel (%p222) target = $region29
    $region28: #{feed_forward.1} parent=1 // pred_region
      %v225 = vld [vmem:[#allocation2] sm:$0xff]
      %v226 = vld [vmem:[#allocation2 + $0x8] sm:$0xff]
      %v227 = vld [vmem:[%s4] sm:$0x1]
      %v229 = vlaneseq
      %v230 = vshrl.u32 %v229, 7
      %v231 = vsub.s32 0, %v230
      %v232 = vrot.slane %v227, %v231
      %v234 = vadd.f32 %v225, %v232
      %v235 = vadd.f32 %v226, %v232
      %236 = vst.msk [vmem:[#allocation3] sm:$0xff] %vm41, %v234
      %237 = vst.msk [vmem:[#allocation3 + $0x8] sm:$0xff] %vm41, %v235
    $region29: #{feed_forward.1} parent=1 // pred_fallthru
      _
    // Predicated region
    $region30: #{feed_forward.1} parent=1 // pred_check
      _
    $region31: #{feed_forward.1} parent=1 // pred_check_branch
      %239 = sbr.rel (0) target = $region33
    $region32: #{feed_forward.1} parent=1 // pred_region
      %s241 = ssub.s32 256, 256
      %242 = vsyncadd [#allocation4], %s241
      %s243 = sshll.u32 [#allocation3], 4
      %s244 = int_to_ptr.vmem [resolvable:$true] %s243
      %249 = dma.vmem_to_hbm [thread:$0]  %s244, 256, %s5, [#allocation4], 128, 128, 8
    $region33: #{feed_forward.1} parent=1 // pred_fallthru
      _
    // Predicated region
    $region34: #{feed_forward.1} parent=1 // pred_check
      _
    $region35: #{feed_forward.1} parent=1 // pred_check_branch
      %251 = sbr.rel (0) target = $region37
    $region36: #{feed_forward.1} parent=1 // pred_region
      %252 = dma.done [#allocation4], 256
    $region37: #{feed_forward.1} parent=1 // pred_fallthru
      _
    %253 = vsyncpa [#allocation4], 1

</llo_original>
